<compile_context>
chip_gen: v7x
topology: tpu7x:2x2x1
jax: 0.10.0
libtpu: 0.0.40
codegen_flags: <defaults>
</compile_context>

<pallas_src>
import jax
import jax.numpy as jnp
from jax.experimental import pallas as pl
from jax.experimental.pallas import tpu as pltpu


def _round_up(n, m):
    return ((n + m - 1) // m) * m


def linear_kernel(x_ref, w_ref, b_ref, o_ref):
    # x_ref: (TB, IN)   streamed batch tile
    # w_ref: (IN, OUT)  pre-transposed weight, resident across the grid
    # b_ref: (1, OUT)   bias, resident across the grid
    # o_ref: (TB, OUT)
    y = jnp.dot(x_ref[...], w_ref[...], preferred_element_type=jnp.float32)
    o_ref[...] = (y + b_ref[...]).astype(o_ref.dtype)


def linear_regressor_forward(x, weight, bias, *, block_rows=2048):
    """Pallas equivalent of nn.Linear(input_size, output_size)(x).

    x:      (B, IN)    float
    weight: (OUT, IN)  PyTorch nn.Linear layout
    bias:   (OUT,)
    returns (B, OUT)
    """
    B, IN = x.shape
    OUT, IN2 = weight.shape
    assert IN == IN2, (IN, IN2)

    # One-time layout choices in the wrapper (free): transposed weight so the
    # kernel contraction is x @ w_t with no in-kernel .T; 2-D bias for TPU.
    w_t = weight.T                # (IN, OUT)
    bias2d = bias.reshape(1, OUT)

    # Batch tile: multiple of 8 (sublane granularity).  2048 rows lane-pad to
    # (2048, 128) f32 = 1 MiB per buffer; double-buffered input + output is
    # ~4 MiB, comfortably inside scoped VMEM on v5e / v6e / v7x.
    tb = min(_round_up(block_rows, 8), _round_up(B, 8))
    b_padded = _round_up(B, tb)
    if b_padded != B:
        x = jnp.pad(x, ((0, b_padded - B), (0, 0)))
    grid = (b_padded // tb,)

    out = pl.pallas_call(
        linear_kernel,
        out_shape=jax.ShapeDtypeStruct((b_padded, OUT), x.dtype),
        grid_spec=pl.GridSpec(
            grid=grid,
            in_specs=[
                # Streamed batch tiles.
                pl.BlockSpec((tb, IN), lambda i: (i, 0)),
                # Constant index_map -> fetched once, stays resident in VMEM.
                pl.BlockSpec((IN, OUT), lambda i: (0, 0)),
                pl.BlockSpec((1, OUT), lambda i: (0, 0)),
            ],
            out_specs=pl.BlockSpec((tb, OUT), lambda i: (i, 0)),
        ),
        compiler_params=pltpu.CompilerParams(
            # Batch grid steps are independent: lets Mosaic shard them across
            # both TensorCores on v7x.
            dimension_semantics=("parallel",),
        ),
    )(x, w_t, bias2d)

    return out[:B] if b_padded != B else out


def init_linear_params(key, in_features, out_features, dtype=jnp.float32):
    # Deterministic init mimicking PyTorch nn.Linear default:
    # U(-1/sqrt(in_features), 1/sqrt(in_features)) for weight and bias.
    kw, kb = jax.random.split(key)
    bound = 1.0 / jnp.sqrt(jnp.float32(in_features))
    weight = jax.random.uniform(
        kw, (out_features, in_features), dtype, minval=-bound, maxval=bound
    )
    bias = jax.random.uniform(
        kb, (out_features,), dtype, minval=-bound, maxval=bound
    )
    return weight, bias


if __name__ == "__main__":
    key = jax.random.PRNGKey(0)
    k_x, k_p = jax.random.split(key)

    batch, input_size, output_size = 300, 9, 2
    x = jax.random.normal(k_x, (batch, input_size), dtype=jnp.float32)
    weight, bias = init_linear_params(k_p, input_size, output_size)

    # Small block_rows here so the demo exercises multiple grid steps and the
    # pad + slice path for a non-multiple batch; production default is 2048.
    y = linear_regressor_forward(x, weight, bias, block_rows=128)
    jax.block_until_ready(y)

    # Sanity check against plain-JAX reference (same semantics as nn.Linear).
    y_ref = x @ weight.T + bias
    assert y.shape == (batch, output_size)
    assert jnp.allclose(y, y_ref, atol=1e-5, rtol=1e-5)

    print("KERNEL_OK")
</pallas_src>

<mosaic_0001>
module attributes {stable_mosaic.version = 11 : i64} {
  func.func @linear_kernel(%arg0: i32, %arg1: memref<128x9xf32, #tpu.memory_space<vmem>>, %arg2: memref<9x2xf32, #tpu.memory_space<vmem>>, %arg3: memref<1x2xf32, #tpu.memory_space<vmem>>, %arg4: memref<128x2xf32, #tpu.memory_space<vmem>>) attributes {dimension_semantics = [#tpu.dimension_semantics<parallel>], iteration_bounds = array<i64: 3>, scalar_prefetch = 0 : i64, scratch_operands = 0 : i64, tpu.core_type = #tpu.core_type<tc>, window_params = [{transform_indices = @transform_0, window_bounds = array<i64: 128, 9>}, {pipeline_mode = #tpu.pipeline_mode<synchronous>, transform_indices = @transform_1, window_bounds = array<i64: 9, 2>}, {pipeline_mode = #tpu.pipeline_mode<synchronous>, transform_indices = @transform_2, window_bounds = array<i64: 1, 2>}, {transform_indices = @transform_3, window_bounds = array<i64: 128, 2>}]} {
    %c0 = arith.constant 0 : index
    %c0_0 = arith.constant 0 : index
    %0 = vector.load %arg1[%c0, %c0_0] : memref<128x9xf32, #tpu.memory_space<vmem>>, vector<128x9xf32>
    %c0_1 = arith.constant 0 : index
    %c0_2 = arith.constant 0 : index
    %1 = vector.load %arg2[%c0_1, %c0_2] : memref<9x2xf32, #tpu.memory_space<vmem>>, vector<9x2xf32>
    %cst = arith.constant dense<0.000000e+00> : vector<128x2xf32>
    %2 = tpu.matmul %0, %1, %cst {dimension_numbers = #tpu.dot_dimension_numbers<[1], [0], [0], [1], [0, 0, 1, 1], [], []>} : vector<128x9xf32>, vector<9x2xf32>, vector<128x2xf32> -> vector<128x2xf32>
    %c0_3 = arith.constant 0 : index
    %c0_4 = arith.constant 0 : index
    %3 = vector.load %arg3[%c0_3, %c0_4] : memref<1x2xf32, #tpu.memory_space<vmem>>, vector<1x2xf32>
    %4 = vector.broadcast %3 : vector<1x2xf32> to vector<128x2xf32>
    %5 = arith.addf %2, %4 : vector<128x2xf32>
    %c0_5 = arith.constant 0 : index
    %c0_6 = arith.constant 0 : index
    %6 = vector.load %arg4[%c0_5, %c0_6] : memref<128x2xf32, #tpu.memory_space<vmem>>, vector<128x2xf32>
    tpu.vector_store %arg4[%c0_5, %c0_6], %5 {strides = array<i32>} : memref<128x2xf32, #tpu.memory_space<vmem>>, vector<128x2xf32>,
    return
  }
  func.func @transform_0(%arg0: i32) -> (i32, i32) {
    %c0_i32 = arith.constant 0 : i32
    %c0_i32_0 = arith.constant 0 : i32
    return %arg0, %c0_i32 : i32, i32
  }
  func.func @transform_1(%arg0: i32) -> (i32, i32) {
    %c0_i32 = arith.constant 0 : i32
    %c0_i32_0 = arith.constant 0 : i32
    %c0_i32_1 = arith.constant 0 : i32
    return %c0_i32, %c0_i32_0 : i32, i32
  }
  func.func @transform_2(%arg0: i32) -> (i32, i32) {
    %c0_i32 = arith.constant 0 : i32
    %c0_i32_0 = arith.constant 0 : i32
    %c0_i32_1 = arith.constant 0 : i32
    return %c0_i32, %c0_i32_0 : i32, i32
  }
  func.func @transform_3(%arg0: i32) -> (i32, i32) {
    %c0_i32 = arith.constant 0 : i32
    %c0_i32_0 = arith.constant 0 : i32
    return %arg0, %c0_i32 : i32, i32
  }
}

</mosaic_0001>

<llo_original>
// kernel: tpu_custom_call.1
$region0: #{tpu_custom_call.1}
  #allocation0 [shape = 'u32[]', space=smem, size = 0x4, offset = 0x4, fixed_abs, tag = 'smem constant byte address 0x4 - core index']
  #allocation1 [shape = 'u32[144,128]{1,0:T(1,128)}', space=vmem, size = 0x12000, scoped, tag = 'internal scratch']
  %s0 = inlined_call_operand.vmem [shape: f32[384,9], index: 0, kind: input, shape index: {}]
  %s1 = inlined_call_operand.vmem [shape: f32[9,2], index: 1, kind: input, shape index: {}]
  %s2 = inlined_call_operand.vmem [shape: f32[1,2], index: 2, kind: input, shape index: {}]
  %s3 = inlined_call_operand.vmem [shape: f32[384,2], index: 3, kind: output, shape index: {}]
  %s4 = sld [smem:[#allocation0]]
  $region45: #{tpu_custom_call.1} parent=0
    _
  %s6 = ssub.s32 1, %s4
  %s7 = scalar_select 0, %s6, %s4
  loop: start=0, step=1, limit=5
  $region2: #{tpu_custom_call.1} parent=0 // loop_pre_header
    _
  $region3: #{tpu_custom_call.1} parent=0 // loop_header
    %s9 = sphi 0, %s13
    %p10 = scmp.ge.s32.totalorder %s9, 5
    %s19 = sphi 0, %s21
    %s22 = sphi 0, %s19
    %s23 = sphi 0, %s22
    %s39 = sphi 0, %s23
    %s43 = sphi 0, %s43
    %s45 = sphi 0, %s43
    %s46 = sphi 0, %s45
    %s60 = sphi 0, %s46
    %s64 = sphi 0, %s64
    %s66 = sphi 0, %s64
    %s67 = sphi 0, %s66
    %s81 = sphi 0, %s67
    %s87 = sphi 0, %s89
    %s90 = sphi 0, %s87
    %s91 = sphi 0, %s90
    %s107 = sphi 0, %s91
  $region4: #{tpu_custom_call.1} parent=0 // loop_header_branch
    %12 = sbr.rel (%p10) target = $region8
  $region5: #{tpu_custom_call.1} parent=0 // loop_body
    %s14 = ssub.s32 %s9, 1
    %s15 = ssub.s32 %s9, 2
    %s16 = sadd.s32 %s9, 1
    %s17 = ssub.s32 %s9, %s16
    %p18 = scmp.eq.s32.totalorder %s17, 0
    %s20 = sadd.s32 %s19, 1
    %s21 = scalar_select %p18, %s19, %s20
    %p24 = pneg %p18
    %p25 = scmp.eq.s32.totalorder %s9, 2
    %p26 = por %p24, %p25
    %p27 = scmp.ne.s32.totalorder %s19, %s22
    %p28 = scmp.eq.s32.totalorder %s9, 0
    %p29 = por %p27, %p28
    %p30 = scmp.ne.s32.totalorder %s19, %s22
    %p31 = scmp.eq.s32.totalorder %s14, 2
    %p32 = por %p30, %p31
    %p33 = scmp.ne.s32.totalorder %s22, %s23
    %p34 = scmp.eq.s32.totalorder %s14, 0
    %p35 = por %p33, %p34
    %p36 = scmp.ne.s32.totalorder %s22, %s23
    %p37 = scmp.eq.s32.totalorder %s15, 2
    %p38 = por %p36, %p37
    %p40 = scmp.ne.s32.totalorder %s23, %s39
    %p41 = scmp.eq.s32.totalorder %s15, 0
    %p42 = por %p40, %p41
    %s44 = sadd.s32 %s43, 1
    %p47 = scmp.eq.s32.totalorder %s9, 2
    %p48 = scmp.ne.s32.totalorder %s43, %s45
    %p49 = scmp.eq.s32.totalorder %s9, 0
    %p50 = por %p48, %p49
    %p51 = scmp.ne.s32.totalorder %s43, %s45
    %p52 = scmp.eq.s32.totalorder %s14, 2
    %p53 = por %p51, %p52
    %p54 = scmp.ne.s32.totalorder %s45, %s46
    %p55 = scmp.eq.s32.totalorder %s14, 0
    %p56 = por %p54, %p55
    %p57 = scmp.ne.s32.totalorder %s45, %s46
    %p58 = scmp.eq.s32.totalorder %s15, 2
    %p59 = por %p57, %p58
    %p61 = scmp.ne.s32.totalorder %s46, %s60
    %p62 = scmp.eq.s32.totalorder %s15, 0
    %p63 = por %p61, %p62
    %s65 = sadd.s32 %s64, 1
    %p68 = scmp.eq.s32.totalorder %s9, 2
    %p69 = scmp.ne.s32.totalorder %s64, %s66
    %p70 = scmp.eq.s32.totalorder %s9, 0
    %p71 = por %p69, %p70
    %p72 = scmp.ne.s32.totalorder %s64, %s66
    %p73 = scmp.eq.s32.totalorder %s14, 2
    %p74 = por %p72, %p73
    %p75 = scmp.ne.s32.totalorder %s66, %s67
    %p76 = scmp.eq.s32.totalorder %s14, 0
    %p77 = por %p75, %p76
    %p78 = scmp.ne.s32.totalorder %s66, %s67
    %p79 = scmp.eq.s32.totalorder %s15, 2
    %p80 = por %p78, %p79
    %p82 = scmp.ne.s32.totalorder %s67, %s81
    %p83 = scmp.eq.s32.totalorder %s15, 0
    %p84 = por %p82, %p83
    %s85 = ssub.s32 %s9, %s16
    %p86 = scmp.eq.s32.totalorder %s85, 0
    %s88 = sadd.s32 %s87, 1
    %s89 = scalar_select %p86, %s87, %s88
    %p92 = pneg %p86
    %p93 = scmp.eq.s32.totalorder %s9, 2
    %p94 = por %p92, %p93
    %p95 = scmp.ne.s32.totalorder %s87, %s90
    %p96 = scmp.eq.s32.totalorder %s9, 0
    %p97 = por %p95, %p96
    %p98 = scmp.ne.s32.totalorder %s87, %s90
    %p99 = scmp.eq.s32.totalorder %s14, 2
    %p100 = por %p98, %p99
    %p101 = scmp.ne.s32.totalorder %s90, %s91
    %p102 = scmp.eq.s32.totalorder %s14, 0
    %p103 = por %p101, %p102
    %p104 = scmp.ne.s32.totalorder %s90, %s91
    %p105 = scmp.eq.s32.totalorder %s15, 2
    %p106 = por %p104, %p105
    %p108 = scmp.ne.s32.totalorder %s91, %s107
    %p109 = scmp.eq.s32.totalorder %s15, 0
    %p110 = por %p108, %p109
    %p111 = scmp.le.s32.totalorder 1, %s9
    %p112 = scmp.lt.s32.totalorder %s9, 4
    %p113 = pnand %p111, %p112
    %p114 = pneg %p113
    // Predicated region
    $region9: #{tpu_custom_call.1} parent=5 // pred_check
      _
    $region10: #{tpu_custom_call.1} parent=5 // pred_check_branch
      %116 = sbr.rel (%p113) target = $region12
    $region11: #{tpu_custom_call.1} parent=5 // pred_region
      %s117 = ssub.s32 %s9, 1
      // Predicated region
      $region13: #{tpu_custom_call.1} parent=11 // pred_check
        %p118 = pneg %p56
      $region14: #{tpu_custom_call.1} parent=11 // pred_check_branch
        %120 = sbr.rel (%p118) target = $region16
      $region15: #{tpu_custom_call.1} parent=11 // pred_region
        _
      $region16: #{tpu_custom_call.1} parent=11 // pred_fallthru
        _
      // Predicated region
      $region17: #{tpu_custom_call.1} parent=11 // pred_check
        %p121 = pneg %p77
      $region18: #{tpu_custom_call.1} parent=11 // pred_check_branch
        %123 = sbr.rel (%p121) target = $region20
      $region19: #{tpu_custom_call.1} parent=11 // pred_region
        _
      $region20: #{tpu_custom_call.1} parent=11 // pred_fallthru
        _
    $region12: #{tpu_custom_call.1} parent=5 // pred_fallthru
      _
    %p124 = scmp.lt.s32.totalorder %s9, 3
    // Predicated region
    $region21: #{tpu_custom_call.1} parent=5 // pred_check
      %p125 = pneg %p124
    $region22: #{tpu_custom_call.1} parent=5 // pred_check_branch
      %127 = sbr.rel (%p125) target = $region24
    $region23: #{tpu_custom_call.1} parent=5 // pred_region
      // Predicated region
      $region25: #{tpu_custom_call.1} parent=23 // pred_check
        %p128 = pneg %p29
      $region26: #{tpu_custom_call.1} parent=23 // pred_check_branch
        %130 = sbr.rel (%p128) target = $region28
      $region27: #{tpu_custom_call.1} parent=23 // pred_region
        %s131 = smul.u32 16, %s9
        %p132 = scmp.lt.s32.totalorder %s131, 47
        %s133 = scalar_select %p132, %s131, 47
        %s134 = smul.addr %s133, 8
        %s135 = scalar_lea.vmem %s0, %s134
        %s136 = smul.u32 16, %s9
      $region28: #{tpu_custom_call.1} parent=23 // pred_fallthru
        _
    $region24: #{tpu_custom_call.1} parent=5 // pred_fallthru
      _
    %p137 = scmp.le.s32.totalorder 1, %s9
    %p138 = scmp.lt.s32.totalorder %s9, 4
    %p139 = pnand %p137, %p138
    %p140 = pneg %p139
    // Predicated region
    $region29: #{tpu_custom_call.1} parent=5 // pred_check
      _
    $region30: #{tpu_custom_call.1} parent=5 // pred_check_branch
      %142 = sbr.rel (%p139) target = $region32
    $region31: #{tpu_custom_call.1} parent=5 // pred_region
      %s143 = ssub.s32 %s9, 1
      %s144 = smul.u32 16, %s14
      %p145 = scmp.lt.s32.totalorder %s144, 47
      %s146 = scalar_select %p145, %s144, 47
      %s147 = smul.addr %s146, 8
      %s148 = scalar_lea.vmem %s0, %s147
      %p149 = pneg %p35
      %p150 = pneg %p32
      %p151 = pneg %p56
      %p152 = pneg %p53
      %p153 = pneg %p77
      %p154 = pneg %p74
      %p155 = pneg %p103
      %p156 = pneg %p100
      %s157 = smul.u32 16, %s14
      %p158 = scmp.lt.s32.totalorder %s157, 47
      %s159 = scalar_select %p158, %s157, 47
      %s160 = smul.addr %s159, 8
      %s161 = scalar_lea.vmem %s3, %s160
      %s162 = smul.u32 16, %s14
      %p163 = scmp.lt.s32.totalorder %s162, 47
      %s164 = scalar_select %p163, %s162, 47
      %s165 = smul.addr %s164, 8
      %s166 = scalar_lea.vmem %s0, %s165
      %s167 = smul.u32 16, %s14
      %s168 = smul.u32 16, %s14
      %p169 = scmp.lt.s32.totalorder %s168, 47
      %s170 = scalar_select %p169, %s168, 47
      %s171 = smul.addr %s170, 8
      %s172 = scalar_lea.vmem %s3, %s171
      %s173 = smul.u32 16, %s14
      %v174 = vld [vmem:[%s166] sm:$0xff]
      %v175 = vld [vmem:[%s166 + $0x8] sm:$0xff]
      %v176 = vld [vmem:[%s166 + $0x10] sm:$0xff]
      %v177 = vld [vmem:[%s166 + $0x18] sm:$0xff]
      %v178 = vld [vmem:[%s166 + $0x20] sm:$0xff]
      %v179 = vld [vmem:[%s166 + $0x28] sm:$0xff]
      %v180 = vld [vmem:[%s166 + $0x30] sm:$0xff]
      %v181 = vld [vmem:[%s166 + $0x38] sm:$0xff]
      %v182 = vld [vmem:[%s166 + $0x40] sm:$0xff]
      %v183 = vld [vmem:[%s166 + $0x48] sm:$0xff]
      %v184 = vld [vmem:[%s166 + $0x50] sm:$0xff]
      %v185 = vld [vmem:[%s166 + $0x58] sm:$0xff]
      %v186 = vld [vmem:[%s166 + $0x60] sm:$0xff]
      %v187 = vld [vmem:[%s166 + $0x68] sm:$0xff]
      %v188 = vld [vmem:[%s166 + $0x70] sm:$0xff]
      %v189 = vld [vmem:[%s166 + $0x78] sm:$0xff]
      %v190 = vld [vmem:[%s1] sm:$0xff]
      %v191 = vld [vmem:[%s1 + $0x8] sm:$0x1]
      %v192 = vld [vmem:[%s2] sm:$0x1]
      %v194 = vlaneseq
      %v195 = vshrl.u32 %v194, 7
      %v196 = vsub.s32 0, %v195
      %v197 = vrot.slane %v192, %v196
      %vm199 = vcmask 72704
      %v201 = vsel %vm199, %v174, 0
      %v204 = vsel %vm199, %v175, 0
      %v207 = vsel %vm199, %v176, 0
      %v210 = vsel %vm199, %v177, 0
      %v213 = vsel %vm199, %v178, 0
      %v216 = vsel %vm199, %v179, 0
      %v219 = vsel %vm199, %v180, 0
      %v222 = vsel %vm199, %v181, 0
      %v225 = vsel %vm199, %v182, 0
      %v228 = vsel %vm199, %v183, 0
      %v231 = vsel %vm199, %v184, 0
      %v234 = vsel %vm199, %v185, 0
      %v237 = vsel %vm199, %v186, 0
      %v240 = vsel %vm199, %v187, 0
      %v243 = vsel %vm199, %v188, 0
      %v246 = vsel %vm199, %v189, 0
      %vm248 = vcmask 1040384
      %v250 = vsel %vm248, %v191, 0
      %252 = vmatprep.subr.mxu0 0.0
      %253 = vmatpush1.msra.mxu0 %v190
      %254 = vmatprep.subr.mxu0 0.0
      %255 = vmatpush1.msra.mxu0 %v250
      %256 = vmatprep.subr.mxu0 0.0
      %257 = vmatpush1.msra.mxu0 0.0
      %258 = vmatprep.subr.mxu0 0.0
      %259 = vmatpush1.msra.mxu0 0.0
      %260 = vmatprep.subr.mxu0 0.0
      %261 = vmatpush1.msra.mxu0 0.0
      %262 = vmatprep.subr.mxu0 0.0
      %263 = vmatpush1.msra.mxu0 0.0
      %264 = vmatprep.subr.mxu0 0.0
      %265 = vmatpush1.msra.mxu0 0.0
      %266 = vmatprep.subr.mxu0 0.0
      %267 = vmatpush1.msra.mxu0 0.0
      %268 = vmatprep.subr.mxu0 0.0
      %269 = vmatpush1.msra.mxu0 0.0
      %270 = vmatprep.subr.mxu0 0.0
      %271 = vmatpush1.msra.mxu0 0.0
      %272 = vmatprep.subr.mxu0 0.0
      %273 = vmatpush1.msra.mxu0 0.0
      %274 = vmatprep.subr.mxu0 0.0
      %275 = vmatpush1.msra.mxu0 0.0
      %276 = vmatprep.subr.mxu0 0.0
      %277 = vmatpush1.msra.mxu0 0.0
      %278 = vmatprep.subr.mxu0 0.0
      %279 = vmatpush1.msra.mxu0 0.0
      %280 = vmatprep.subr.mxu0 0.0
      %281 = vmatpush1.msra.mxu0 0.0
      %282 = vmatprep.subr.mxu0 0.0
      %283 = vmatpush1.msra.mxu0 0.0
      %284 = vmatprep.subr.mxu0 0.0
      %285 = vmatpush1.msra.mxu0 0.0
      %286 = vmatprep.subr.mxu0 0.0
      %287 = vmatpush1.msra.mxu0 0.0
      %288 = vmatprep.subr.mxu0 0.0
      %289 = vmatpush1.msra.mxu0 0.0
      %290 = vmatprep.subr.mxu0 0.0
      %291 = vmatpush1.msra.mxu0 0.0
      %292 = vmatprep.subr.mxu0 0.0
      %293 = vmatpush1.msra.mxu0 0.0
      %294 = vmatprep.subr.mxu0 0.0
      %295 = vmatpush1.msra.mxu0 0.0
      %296 = vmatprep.subr.mxu0 0.0
      %297 = vmatpush1.msra.mxu0 0.0
      %298 = vmatprep.subr.mxu0 0.0
      %299 = vmatpush1.msra.mxu0 0.0
      %300 = vmatprep.subr.mxu0 0.0
      %301 = vmatpush1.msra.mxu0 0.0
      %302 = vmatprep.subr.mxu0 0.0
      %303 = vmatpush1.msra.mxu0 0.0
      %304 = vmatprep.subr.mxu0 0.0
      %305 = vmatpush1.msra.mxu0 0.0
      %306 = vmatprep.subr.mxu0 0.0
      %307 = vmatpush1.msra.mxu0 0.0
      %308 = vmatprep.subr.mxu0 0.0
      %309 = vmatpush1.msra.mxu0 0.0
      %310 = vmatprep.subr.mxu0 0.0
      %311 = vmatpush1.msra.mxu0 0.0
      %312 = vmatprep.subr.mxu0 0.0
      %313 = vmatpush1.msra.mxu0 0.0
      %314 = vmatprep.subr.mxu0 0.0
      %315 = vmatpush1.msra.mxu0 0.0
      %316 = vmatprep.mubr.f32.mxu0 0.0
      %317 = vmatmul.mubr.f32.gmra.mrb[0].mxu0 %v201
      %v318 = vpop.f32.mrb[0].mxu0
      %v319 = vadd.f32 %v197, %v318
      %v320 = vpop.f32.mrb[0].mxu0
      %321 = vmatprep.mubr.f32.mxu0 0.0
      %322 = vmatmul.mubr.f32.gmra.mrb[0].mxu0 %v204
      %v323 = vpop.f32.mrb[0].mxu0
      %v324 = vadd.f32 %v197, %v323
      %v325 = vpop.f32.mrb[0].mxu0
      %326 = vmatprep.mubr.f32.mxu0 0.0
      %327 = vmatmul.mubr.f32.gmra.mrb[0].mxu0 %v207
      %v328 = vpop.f32.mrb[0].mxu0
      %v329 = vadd.f32 %v197, %v328
      %v330 = vpop.f32.mrb[0].mxu0
      %331 = vmatprep.mubr.f32.mxu0 0.0
      %332 = vmatmul.mubr.f32.gmra.mrb[0].mxu0 %v210
      %v333 = vpop.f32.mrb[0].mxu0
      %v334 = vadd.f32 %v197, %v333
      %v335 = vpop.f32.mrb[0].mxu0
      %336 = vmatprep.mubr.f32.mxu0 0.0
      %337 = vmatmul.mubr.f32.gmra.mrb[0].mxu0 %v213
      %v338 = vpop.f32.mrb[0].mxu0
      %v339 = vadd.f32 %v197, %v338
      %v340 = vpop.f32.mrb[0].mxu0
      %341 = vmatprep.mubr.f32.mxu0 0.0
      %342 = vmatmul.mubr.f32.gmra.mrb[0].mxu0 %v216
      %v343 = vpop.f32.mrb[0].mxu0
      %v344 = vadd.f32 %v197, %v343
      %v345 = vpop.f32.mrb[0].mxu0
      %346 = vmatprep.mubr.f32.mxu0 0.0
      %347 = vmatmul.mubr.f32.gmra.mrb[0].mxu0 %v219
      %v348 = vpop.f32.mrb[0].mxu0
      %v349 = vadd.f32 %v197, %v348
      %v350 = vpop.f32.mrb[0].mxu0
      %351 = vmatprep.mubr.f32.mxu0 0.0
      %352 = vmatmul.mubr.f32.gmra.mrb[0].mxu0 %v222
      %v353 = vpop.f32.mrb[0].mxu0
      %v354 = vadd.f32 %v197, %v353
      %v355 = vpop.f32.mrb[0].mxu0
      %356 = vmatprep.mubr.f32.mxu0 0.0
      %357 = vmatmul.mubr.f32.gmra.mrb[0].mxu0 %v225
      %v358 = vpop.f32.mrb[0].mxu0
      %v359 = vadd.f32 %v197, %v358
      %v360 = vpop.f32.mrb[0].mxu0
      %361 = vmatprep.mubr.f32.mxu0 0.0
      %362 = vmatmul.mubr.f32.gmra.mrb[0].mxu0 %v228
      %v363 = vpop.f32.mrb[0].mxu0
      %v364 = vadd.f32 %v197, %v363
      %v365 = vpop.f32.mrb[0].mxu0
      %366 = vmatprep.mubr.f32.mxu0 0.0
      %367 = vmatmul.mubr.f32.gmra.mrb[0].mxu0 %v231
      %v368 = vpop.f32.mrb[0].mxu0
      %v369 = vadd.f32 %v197, %v368
      %v370 = vpop.f32.mrb[0].mxu0
      %371 = vmatprep.mubr.f32.mxu0 0.0
      %372 = vmatmul.mubr.f32.gmra.mrb[0].mxu0 %v234
      %v373 = vpop.f32.mrb[0].mxu0
      %v374 = vadd.f32 %v197, %v373
      %v375 = vpop.f32.mrb[0].mxu0
      %376 = vmatprep.mubr.f32.mxu0 0.0
      %377 = vmatmul.mubr.f32.gmra.mrb[0].mxu0 %v237
      %v378 = vpop.f32.mrb[0].mxu0
      %v379 = vadd.f32 %v197, %v378
      %v380 = vpop.f32.mrb[0].mxu0
      %381 = vmatprep.mubr.f32.mxu0 0.0
      %382 = vmatmul.mubr.f32.gmra.mrb[0].mxu0 %v240
      %v383 = vpop.f32.mrb[0].mxu0
      %v384 = vadd.f32 %v197, %v383
      %v385 = vpop.f32.mrb[0].mxu0
      %386 = vmatprep.mubr.f32.mxu0 0.0
      %387 = vmatmul.mubr.f32.gmra.mrb[0].mxu0 %v243
      %v388 = vpop.f32.mrb[0].mxu0
      %v389 = vadd.f32 %v197, %v388
      %v390 = vpop.f32.mrb[0].mxu0
      %391 = vmatprep.mubr.f32.mxu0 0.0
      %392 = vmatmul.mubr.f32.gmra.mrb[0].mxu0 %v246
      %v393 = vpop.f32.mrb[0].mxu0
      %v394 = vadd.f32 %v197, %v393
      %v395 = vpop.f32.mrb[0].mxu0
      %396 = vdwg.mxu0
      %vm397 = vcmask 15360
      %398 = vst.msk [vmem:[%s172] sm:$0xff] %vm397, %v319
      %399 = vst.msk [vmem:[%s172 + $0x8] sm:$0xff] %vm397, %v324
      %400 = vst.msk [vmem:[%s172 + $0x10] sm:$0xff] %vm397, %v329
      %401 = vst.msk [vmem:[%s172 + $0x18] sm:$0xff] %vm397, %v334
      %402 = vst.msk [vmem:[%s172 + $0x20] sm:$0xff] %vm397, %v339
      %403 = vst.msk [vmem:[%s172 + $0x28] sm:$0xff] %vm397, %v344
      %404 = vst.msk [vmem:[%s172 + $0x30] sm:$0xff] %vm397, %v349
      %405 = vst.msk [vmem:[%s172 + $0x38] sm:$0xff] %vm397, %v354
      %406 = vst.msk [vmem:[%s172 + $0x40] sm:$0xff] %vm397, %v359
      %407 = vst.msk [vmem:[%s172 + $0x48] sm:$0xff] %vm397, %v364
      %408 = vst.msk [vmem:[%s172 + $0x50] sm:$0xff] %vm397, %v369
      %409 = vst.msk [vmem:[%s172 + $0x58] sm:$0xff] %vm397, %v374
      %410 = vst.msk [vmem:[%s172 + $0x60] sm:$0xff] %vm397, %v379
      %411 = vst.msk [vmem:[%s172 + $0x68] sm:$0xff] %vm397, %v384
      %412 = vst.msk [vmem:[%s172 + $0x70] sm:$0xff] %vm397, %v389
      %413 = vst.msk [vmem:[%s172 + $0x78] sm:$0xff] %vm397, %v394
      %s414 = smul.u32 16, %s14
      %p415 = scmp.lt.s32.totalorder %s414, 47
      %s416 = scalar_select %p415, %s414, 47
      %s417 = smul.addr %s416, 8
      %s418 = scalar_lea.vmem %s3, %s417
      // Predicated region
      $region33: #{tpu_custom_call.1} parent=31 // pred_check
        %p419 = pneg %p100
      $region34: #{tpu_custom_call.1} parent=31 // pred_check_branch
        %421 = sbr.rel (%p419) target = $region36
      $region35: #{tpu_custom_call.1} parent=31 // pred_region
        %s422 = smul.u32 16, %s14
      $region36: #{tpu_custom_call.1} parent=31 // pred_fallthru
        _
    $region32: #{tpu_custom_call.1} parent=5 // pred_fallthru
      _
    %p423 = scmp.le.s32.totalorder 2, %s9
    // Predicated region
    $region37: #{tpu_custom_call.1} parent=5 // pred_check
      %p424 = pneg %p423
    $region38: #{tpu_custom_call.1} parent=5 // pred_check_branch
      %426 = sbr.rel (%p424) target = $region40
    $region39: #{tpu_custom_call.1} parent=5 // pred_region
      %s427 = ssub.s32 %s9, 2
      // Predicated region
      $region41: #{tpu_custom_call.1} parent=39 // pred_check
        %p428 = pneg %p106
      $region42: #{tpu_custom_call.1} parent=39 // pred_check_branch
        %430 = sbr.rel (%p428) target = $region44
      $region43: #{tpu_custom_call.1} parent=39 // pred_region
        %s431 = smul.u32 16, %s15
        %p432 = scmp.lt.s32.totalorder %s431, 47
        %s433 = scalar_select %p432, %s431, 47
        %s434 = smul.addr %s433, 8
        %s435 = scalar_lea.vmem %s3, %s434
      $region44: #{tpu_custom_call.1} parent=39 // pred_fallthru
        _
    $region40: #{tpu_custom_call.1} parent=5 // pred_fallthru
      _
  $region6: #{tpu_custom_call.1} parent=0 // loop_footer
    %s13 = sadd.s32 1, %s9
  $region7: #{tpu_custom_call.1} parent=0 // loop_footer_branch
    %8 = sbr.rel target = $region3
  $region8: #{tpu_custom_call.1} parent=0 // loop_exit
    _

</llo_original>
